<compile_context>
chip_gen: v7x
topology: tpu7x:2x2x1
jax: 0.10.0
libtpu: 0.0.40
codegen_flags: <defaults>
</compile_context>

<pallas_src>
import jax
import jax.numpy as jnp
from jax.experimental import pallas as pl
from jax.experimental.pallas import tpu as pltpu


def _hopfield_update_kernel(x_ref, y_ref, o_ref):
    # x_ref: (TM, 2)  columns = [x_initial/beta, x_final/beta]
    # y_ref: (2, TN)  rows    = [y_initial,      y_final]
    # o_ref: (TM, TN)
    x = x_ref[...]
    y = y_ref[...]
    xi = x[:, 0:1]   # (TM, 1)
    xf = x[:, 1:2]   # (TM, 1)
    yi = y[0:1, :]   # (1, TN)
    yf = y[1:2, :]   # (1, TN)
    # Broadcasted outer products, fused difference. 1/beta already folded in.
    o_ref[...] = xf * yf - xi * yi


def _pick_tiles(M, N):
    """Lane-dense output tiles respecting the (8,128) BlockSpec constraint."""
    # TN: wide multiple of 128 (unmasked vst), else fall back to the full dim
    # (full-extent blocks are always legal, just masked if N % 128 != 0).
    TN = N
    for cand in (2048, 1024, 512, 256, 128):
        if N % cand == 0:
            TN = cand
            break
    # TM: multiple of 8, capped so TM*TN*4B <= 4 MiB per output block
    # (8 MiB double-buffered -> safe under every generation's scoped VMEM).
    max_tm = max((1 << 20) // max(TN, 1), 8)
    TM = M
    for cand in (1024, 512, 256, 128, 64, 32, 16, 8):
        if M % cand == 0 and cand <= max_tm:
            TM = cand
            break
    return TM, TN


def hopfield_update(x_initial, y_initial, x_final, y_final, beta=1.0):
    """Pallas equivalent of HopfieldUpdate.forward for 1-D x, y."""
    M = x_initial.shape[0]
    N = y_initial.shape[0]
    assert x_final.shape == (M,) and y_final.shape == (N,)

    inv_beta = jnp.float32(1.0 / beta)
    # Merge the four vectors into two arrays; fold 1/beta into x (O(M) work).
    x = jnp.stack([x_initial, x_final], axis=1).astype(jnp.float32) * inv_beta  # (M, 2)
    y = jnp.stack([y_initial, y_final], axis=0).astype(jnp.float32)             # (2, N)

    TM, TN = _pick_tiles(M, N)
    grid = (pl.cdiv(M, TM), pl.cdiv(N, TN))

    return pl.pallas_call(
        _hopfield_update_kernel,
        out_shape=jax.ShapeDtypeStruct((M, N), jnp.float32),
        grid=grid,
        in_specs=[
            pl.BlockSpec((TM, 2), lambda i, j: (i, 0)),
            pl.BlockSpec((2, TN), lambda i, j: (0, j)),
        ],
        out_specs=pl.BlockSpec((TM, TN), lambda i, j: (i, j)),
        compiler_params=pltpu.CompilerParams(
            dimension_semantics=("parallel", "parallel"),
            vmem_limit_bytes=32 << 20,
        ),
    )(x, y)


if __name__ == "__main__":
    key = jax.random.PRNGKey(0)
    k1, k2, k3, k4 = jax.random.split(key, 4)

    M, N = 32, 128
    beta = 2.0

    x_initial = jax.random.normal(k1, (M,), dtype=jnp.float32)
    y_initial = jax.random.normal(k2, (N,), dtype=jnp.float32)
    x_final = jax.random.normal(k3, (M,), dtype=jnp.float32)
    y_final = jax.random.normal(k4, (N,), dtype=jnp.float32)

    out = hopfield_update(x_initial, y_initial, x_final, y_final, beta=beta)
    out = jax.block_until_ready(out)

    # Reference check in plain JAX (mirrors torch.outer semantics).
    ref = (jnp.outer(x_final, y_final) - jnp.outer(x_initial, y_initial)) / beta
    assert out.shape == (M, N)
    assert jnp.allclose(out, ref, atol=1e-5, rtol=1e-5)

    print("KERNEL_OK")
</pallas_src>

<mosaic_0001>
module attributes {stable_mosaic.version = 11 : i64} {
  func.func @_hopfield_update_kernel(%arg0: i32, %arg1: i32, %arg2: memref<32x2xf32, #tpu.memory_space<vmem>>, %arg3: memref<2x128xf32, #tpu.memory_space<vmem>>, %arg4: memref<32x128xf32, #tpu.memory_space<vmem>>) attributes {dimension_semantics = [#tpu.dimension_semantics<parallel>, #tpu.dimension_semantics<parallel>], iteration_bounds = array<i64: 1, 1>, scalar_prefetch = 0 : i64, scratch_operands = 0 : i64, tpu.core_type = #tpu.core_type<tc>, window_params = [{transform_indices = @transform_0, window_bounds = array<i64: 32, 2>}, {transform_indices = @transform_1, window_bounds = array<i64: 2, 128>}, {transform_indices = @transform_2, window_bounds = array<i64: 32, 128>}]} {
    %c0 = arith.constant 0 : index
    %c0_0 = arith.constant 0 : index
    %0 = vector.load %arg2[%c0, %c0_0] : memref<32x2xf32, #tpu.memory_space<vmem>>, vector<32x2xf32>
    %c0_1 = arith.constant 0 : index
    %c0_2 = arith.constant 0 : index
    %1 = vector.load %arg3[%c0_1, %c0_2] : memref<2x128xf32, #tpu.memory_space<vmem>>, vector<2x128xf32>
    %2 = vector.extract_strided_slice %0 {offsets = [0, 0], sizes = [32, 1], strides = [1, 1]} : vector<32x2xf32> to vector<32x1xf32>
    %3 = vector.extract_strided_slice %0 {offsets = [0, 1], sizes = [32, 1], strides = [1, 1]} : vector<32x2xf32> to vector<32x1xf32>
    %4 = vector.extract_strided_slice %1 {offsets = [0, 0], sizes = [1, 128], strides = [1, 1]} : vector<2x128xf32> to vector<1x128xf32>
    %5 = vector.extract_strided_slice %1 {offsets = [1, 0], sizes = [1, 128], strides = [1, 1]} : vector<2x128xf32> to vector<1x128xf32>
    %6 = vector.broadcast %3 : vector<32x1xf32> to vector<32x128xf32>
    %7 = vector.broadcast %5 : vector<1x128xf32> to vector<32x128xf32>
    %8 = arith.mulf %6, %7 : vector<32x128xf32>
    %9 = vector.broadcast %2 : vector<32x1xf32> to vector<32x128xf32>
    %10 = vector.broadcast %4 : vector<1x128xf32> to vector<32x128xf32>
    %11 = arith.mulf %9, %10 : vector<32x128xf32>
    %12 = arith.subf %8, %11 : vector<32x128xf32>
    %c0_3 = arith.constant 0 : index
    %c0_4 = arith.constant 0 : index
    %13 = vector.load %arg4[%c0_3, %c0_4] : memref<32x128xf32, #tpu.memory_space<vmem>>, vector<32x128xf32>
    tpu.vector_store %arg4[%c0_3, %c0_4], %12 {strides = array<i32>} : memref<32x128xf32, #tpu.memory_space<vmem>>, vector<32x128xf32>,
    return
  }
  func.func @transform_0(%arg0: i32, %arg1: i32) -> (i32, i32) {
    %c0_i32 = arith.constant 0 : i32
    %c0_i32_0 = arith.constant 0 : i32
    return %arg0, %c0_i32 : i32, i32
  }
  func.func @transform_1(%arg0: i32, %arg1: i32) -> (i32, i32) {
    %c0_i32 = arith.constant 0 : i32
    %c0_i32_0 = arith.constant 0 : i32
    return %c0_i32, %arg1 : i32, i32
  }
  func.func @transform_2(%arg0: i32, %arg1: i32) -> (i32, i32) {
    %c0_i32 = arith.constant 0 : i32
    return %arg0, %arg1 : i32, i32
  }
}

</mosaic_0001>

<llo_original>
// kernel: tpu_custom_call.1
$region0: #{tpu_custom_call.1}
  #allocation0 [shape = 'u32[]', space=smem, size = 0x4, offset = 0x4, fixed_abs, tag = 'smem constant byte address 0x4 - core index']
  #allocation1 [shape = 'u32[144,128]{1,0:T(1,128)}', space=vmem, size = 0x12000, scoped, tag = 'internal scratch']
  %s0 = inlined_call_operand.vmem [shape: f32[32,2], index: 0, kind: input, shape index: {}]
  %s1 = inlined_call_operand.vmem [shape: f32[2,128], index: 1, kind: input, shape index: {}]
  %s2 = inlined_call_operand.hbm [shape: f32[32,128], index: 2, kind: output, shape index: {}]
  %s3 = sld [smem:[#allocation0]]
  $region18: #{tpu_custom_call.1} parent=0
    _
  %s5 = ssub.s32 1, %s3
  %s6 = scalar_select 0, %s5, %s3
  $region1: #{tpu_custom_call.1} parent=0
    #allocation2 [shape = 'u8[16384]{0}', space=vmem, size = 0x4000, scoped, tag = 'output window, operand 0, single buffered']
    #allocation3 [shape = 's32[1]{0}', space=sflag, size = 0x4, scoped, tag = 'scoped memory for tpu_custom_call.1']
    %7 = vsyncpa [#allocation3], 0
    // Predicated region
    $region2: #{tpu_custom_call.1} parent=1 // pred_check
      _
    $region3: #{tpu_custom_call.1} parent=1 // pred_check_branch
      %9 = sbr.rel (0) target = $region5
    $region4: #{tpu_custom_call.1} parent=1 // pred_region
      _
    $region5: #{tpu_custom_call.1} parent=1 // pred_fallthru
      _
    // Predicated region
    $region6: #{tpu_custom_call.1} parent=1 // pred_check
      _
    $region7: #{tpu_custom_call.1} parent=1 // pred_check_branch
      %11 = sbr.rel (0) target = $region9
    $region8: #{tpu_custom_call.1} parent=1 // pred_region
      _
    $region9: #{tpu_custom_call.1} parent=1 // pred_fallthru
      _
    %v12 = vld [vmem:[%s0] sm:$0xff]
    %v13 = vld [vmem:[%s0 + $0x8] sm:$0xff]
    %v14 = vld [vmem:[%s0 + $0x10] sm:$0xff]
    %v15 = vld [vmem:[%s0 + $0x18] sm:$0xff]
    %v16 = vld [vmem:[%s1] sm:$0x3]
    %18 = vset.pattern.permute.xlu0 1
    %19 = vperm.xlu0 %18, %v12
    %v20 = vpop.permute.xlu0 %19
    %23 = vset.pattern.permute.xlu0 1
    %24 = vperm.xlu0 %23, %v13
    %v25 = vpop.permute.xlu0 %24
    %28 = vset.pattern.permute.xlu0 1
    %29 = vperm.xlu0 %28, %v14
    %v30 = vpop.permute.xlu0 %29
    %33 = vset.pattern.permute.xlu0 1
    %34 = vperm.xlu0 %33, %v15
    %v35 = vpop.permute.xlu0 %34
    %v37 = vlaneseq
    %v38 = vshrl.u32 %v37, 7
    %v39 = vsub.s32 1, %v38
    %v40 = vrot.slane %v16, %v39
    %v41 = vmul.f32 %v20, %v40
    %v42 = vmul.f32 %v25, %v40
    %v43 = vmul.f32 %v30, %v40
    %v44 = vmul.f32 %v35, %v40
    %45 = vset.pattern.permute.xlu0 0
    %46 = vperm.xlu0 %45, %v12
    %v47 = vpop.permute.xlu0 %46
    %49 = vset.pattern.permute.xlu0 0
    %50 = vperm.xlu0 %49, %v13
    %v51 = vpop.permute.xlu0 %50
    %53 = vset.pattern.permute.xlu0 0
    %54 = vperm.xlu0 %53, %v14
    %v55 = vpop.permute.xlu0 %54
    %57 = vset.pattern.permute.xlu0 0
    %58 = vperm.xlu0 %57, %v15
    %v59 = vpop.permute.xlu0 %58
    %v61 = vlaneseq
    %v62 = vshrl.u32 %v61, 7
    %v63 = vsub.s32 0, %v62
    %v64 = vrot.slane %v16, %v63
    %v65 = vmul.f32 %v47, %v64
    %v66 = vmul.f32 %v51, %v64
    %v67 = vmul.f32 %v55, %v64
    %v68 = vmul.f32 %v59, %v64
    %v69 = vsub.f32 %v41, %v65
    %v70 = vsub.f32 %v42, %v66
    %v71 = vsub.f32 %v43, %v67
    %v72 = vsub.f32 %v44, %v68
    %73 = vst [vmem:[#allocation2] sm:$0xff] %v69
    %74 = vst [vmem:[#allocation2 + $0x8] sm:$0xff] %v70
    %75 = vst [vmem:[#allocation2 + $0x10] sm:$0xff] %v71
    %76 = vst [vmem:[#allocation2 + $0x18] sm:$0xff] %v72
    // Predicated region
    $region10: #{tpu_custom_call.1} parent=1 // pred_check
      _
    $region11: #{tpu_custom_call.1} parent=1 // pred_check_branch
      %78 = sbr.rel (0) target = $region13
    $region12: #{tpu_custom_call.1} parent=1 // pred_region
      %s80 = ssub.s32 512, 512
      %81 = vsyncadd [#allocation3], %s80
      %s82 = sshll.u32 [#allocation2], 4
      %s83 = int_to_ptr.vmem [resolvable:$true] %s82
      %88 = dma.vmem_to_hbm [thread:$0]  %s83, 512, %s2, [#allocation3], 128, 128, 8
    $region13: #{tpu_custom_call.1} parent=1 // pred_fallthru
      _
    // Predicated region
    $region14: #{tpu_custom_call.1} parent=1 // pred_check
      _
    $region15: #{tpu_custom_call.1} parent=1 // pred_check_branch
      %90 = sbr.rel (0) target = $region17
    $region16: #{tpu_custom_call.1} parent=1 // pred_region
      %91 = dma.done [#allocation3], 512
    $region17: #{tpu_custom_call.1} parent=1 // pred_fallthru
      _
    %92 = vsyncpa [#allocation3], 1

</llo_original>
